<compile_context>
chip_gen: v7x
topology: tpu7x:2x2x1
jax: 0.10.0
libtpu: 0.0.40
codegen_flags: <defaults>
</compile_context>

<pallas_src>
import jax
import jax.numpy as jnp
from jax import lax
from jax.experimental import pallas as pl
from jax.experimental.pallas import tpu as pltpu


def _inner_product_decoder_kernel(z_ref, w_ref, b_ref, o_ref):
    # z_ref: (Bb*N, F)  -- Bb batch elements, rows flattened
    # w_ref: (F_out, F_in) Conv1d(k=1) weight (NOT pre-transposed)
    # b_ref: (1, F)
    # o_ref: (Bb, N, N)
    Bb, N, _ = o_ref.shape

    # Per-position linear for all Bb*N rows at once.
    # zp[r, g] = sum_f z[r, f] * w[g, f]   (contraction over F_in, no .T)
    zp = lax.dot_general(
        z_ref[...], w_ref[...],
        dimension_numbers=(((1,), (1,)), ((), ())),
        preferred_element_type=jnp.float32,
    )
    zp = zp + b_ref[...]                      # (1, F) broadcasts over rows

    # Per-batch inner product: adj[n, m] = sum_f zp[n, f] * zp[m, f]
    # Unrolled static loop over the (small) batch block; each dot is a plain
    # 2-D MXU matmul contracting over F -- no transpose materialized.
    for b in range(Bb):
        zb = zp[b * N:(b + 1) * N, :]
        logits = lax.dot_general(
            zb, zb,
            dimension_numbers=(((1,), (1,)), ((), ())),
            preferred_element_type=jnp.float32,
        )
        o_ref[b] = jax.nn.sigmoid(logits).astype(o_ref.dtype)


def inner_product_decoder(z, w, bias, *, block_b=None, out_dtype=None):
    """z: [B, N, F], w: [F, F] (squeezed Conv1d(k=1) weight), bias: [F]."""
    B, N, F = z.shape
    out_dtype = out_dtype or z.dtype
    itemsize = jnp.dtype(out_dtype).itemsize

    if block_b is None:
        # Amortize per-grid-step overhead while keeping the double-buffered
        # (Bb, N, N) output block inside a conservative VMEM budget (v7x-safe),
        # and keep the in-kernel unroll small.
        budget = 8 * 1024 * 1024
        cand = max(1, min(B, 8, budget // max(N * N * itemsize, 1)))
        while B % cand:
            cand -= 1
        block_b = cand
    assert B % block_b == 0

    z2 = z.reshape(B * N, F)          # contiguous flatten; free in XLA
    bias2d = bias.reshape(1, F)

    cost = pl.CostEstimate(
        flops=2 * B * N * F * (F + N),
        transcendentals=B * N * N,
        bytes_accessed=(B * N * F + F * F + F) * z.dtype.itemsize
        + B * N * N * itemsize,
    )

    return pl.pallas_call(
        _inner_product_decoder_kernel,
        out_shape=jax.ShapeDtypeStruct((B, N, N), out_dtype),
        grid_spec=pltpu.PrefetchScalarGridSpec(
            num_scalar_prefetch=0,
            grid=(B // block_b,),
            in_specs=[
                pl.BlockSpec((block_b * N, F), lambda i: (i, 0)),   # z rows
                pl.BlockSpec((F, F), lambda i: (0, 0)),             # shared W
                pl.BlockSpec((1, F), lambda i: (0, 0)),             # shared bias
            ],
            out_specs=pl.BlockSpec((block_b, N, N), lambda i: (i, 0, 0)),
        ),
        compiler_params=pltpu.CompilerParams(
            dimension_semantics=("parallel",),
        ),
        cost_estimate=cost,
    )(z2, w, bias2d)


def reference(z, w, bias):
    zp = jnp.einsum("bnf,gf->bng", z, w) + bias[None, None, :]
    return jax.nn.sigmoid(jnp.einsum("bnf,bmf->bnm", zp, zp))


if __name__ == "__main__":
    # Small shapes consistent with the forward: z [B, N, F].
    B, N, F = 2, 64, 32
    key = jax.random.PRNGKey(0)
    kz, kw, kb = jax.random.split(key, 3)

    z = jax.random.normal(kz, (B, N, F), dtype=jnp.float32)

    # Deterministic Conv1d(F, F, kernel_size=1) params (synthetic, no checkpoint).
    # PyTorch weight shape is [F, F, 1]; we keep the squeezed [F_out, F_in] matrix.
    bound = 1.0 / jnp.sqrt(jnp.float32(F))
    w = jax.random.uniform(kw, (F, F), dtype=jnp.float32, minval=-bound, maxval=bound)
    bias = jax.random.uniform(kb, (F,), dtype=jnp.float32, minval=-bound, maxval=bound)

    # NOTE: nn.Dropout is identity in eval mode; we implement inference semantics.
    adj = inner_product_decoder(z, w, bias)
    adj = jax.block_until_ready(adj)

    ref = reference(z, w, bias)
    assert adj.shape == (B, N, N)
    assert jnp.allclose(adj, ref, atol=1e-5, rtol=1e-5)

    print("KERNEL_OK")
</pallas_src>

<mosaic_0001>
module attributes {stable_mosaic.version = 11 : i64} {
  func.func @_inner_product_decoder_kernel(%arg0: i32, %arg1: memref<128x32xf32, #tpu.memory_space<vmem>>, %arg2: memref<32x32xf32, #tpu.memory_space<vmem>>, %arg3: memref<1x32xf32, #tpu.memory_space<vmem>>, %arg4: memref<2x64x64xf32, #tpu.memory_space<vmem>>) attributes {dimension_semantics = [#tpu.dimension_semantics<parallel>], iteration_bounds = array<i64: 1>, scalar_prefetch = 0 : i64, scratch_operands = 0 : i64, tpu.core_type = #tpu.core_type<tc>, window_params = [{transform_indices = @transform_0, window_bounds = array<i64: 128, 32>}, {pipeline_mode = #tpu.pipeline_mode<synchronous>, transform_indices = @transform_1, window_bounds = array<i64: 32, 32>}, {pipeline_mode = #tpu.pipeline_mode<synchronous>, transform_indices = @transform_2, window_bounds = array<i64: 1, 32>}, {transform_indices = @transform_3, window_bounds = array<i64: 2, 64, 64>}]} {
    %c0 = arith.constant 0 : index
    %c0_0 = arith.constant 0 : index
    %0 = vector.load %arg1[%c0, %c0_0] : memref<128x32xf32, #tpu.memory_space<vmem>>, vector<128x32xf32>
    %c0_1 = arith.constant 0 : index
    %c0_2 = arith.constant 0 : index
    %1 = vector.load %arg2[%c0_1, %c0_2] : memref<32x32xf32, #tpu.memory_space<vmem>>, vector<32x32xf32>
    %cst = arith.constant dense<0.000000e+00> : vector<128x32xf32>
    %2 = tpu.matmul %0, %1, %cst {dimension_numbers = #tpu.dot_dimension_numbers<[1], [1], [0], [0], [0, 0, 1, 0], [], []>} : vector<128x32xf32>, vector<32x32xf32>, vector<128x32xf32> -> vector<128x32xf32>
    %c0_3 = arith.constant 0 : index
    %c0_4 = arith.constant 0 : index
    %3 = vector.load %arg3[%c0_3, %c0_4] : memref<1x32xf32, #tpu.memory_space<vmem>>, vector<1x32xf32>
    %4 = vector.broadcast %3 : vector<1x32xf32> to vector<128x32xf32>
    %5 = arith.addf %2, %4 : vector<128x32xf32>
    %6 = vector.extract_strided_slice %5 {offsets = [0, 0], sizes = [64, 32], strides = [1, 1]} : vector<128x32xf32> to vector<64x32xf32>
    %cst_5 = arith.constant dense<0.000000e+00> : vector<64x64xf32>
    %7 = tpu.matmul %6, %6, %cst_5 {dimension_numbers = #tpu.dot_dimension_numbers<[1], [1], [0], [0], [0, 0, 1, 0], [], []>} : vector<64x32xf32>, vector<64x32xf32>, vector<64x64xf32> -> vector<64x64xf32>
    %8 = arith.negf %7 : vector<64x64xf32>
    %9 = math.exp %8 : vector<64x64xf32>
    %cst_6 = arith.constant 1.000000e+00 : f32
    %10 = vector.broadcast %cst_6 : f32 to vector<64x64xf32>
    %11 = arith.addf %10, %9 : vector<64x64xf32>
    %12 = arith.divf %10, %11 : vector<64x64xf32>
    %c0_7 = arith.constant 0 : index
    %c0_8 = arith.constant 0 : index
    %c0_9 = arith.constant 0 : index
    %13 = vector.load %arg4[%c0_7, %c0_8, %c0_9] : memref<2x64x64xf32, #tpu.memory_space<vmem>>, vector<1x64x64xf32>
    %14 = vector.shape_cast %13 : vector<1x64x64xf32> to vector<64x64xf32>
    %15 = vector.shape_cast %12 : vector<64x64xf32> to vector<1x64x64xf32>
    tpu.vector_store %arg4[%c0_7, %c0_8, %c0_9], %15 {strides = array<i32>} : memref<2x64x64xf32, #tpu.memory_space<vmem>>, vector<1x64x64xf32>,
    %16 = vector.extract_strided_slice %5 {offsets = [64, 0], sizes = [64, 32], strides = [1, 1]} : vector<128x32xf32> to vector<64x32xf32>
    %cst_10 = arith.constant dense<0.000000e+00> : vector<64x64xf32>
    %17 = tpu.matmul %16, %16, %cst_10 {dimension_numbers = #tpu.dot_dimension_numbers<[1], [1], [0], [0], [0, 0, 1, 0], [], []>} : vector<64x32xf32>, vector<64x32xf32>, vector<64x64xf32> -> vector<64x64xf32>
    %18 = arith.negf %17 : vector<64x64xf32>
    %19 = math.exp %18 : vector<64x64xf32>
    %cst_11 = arith.constant 1.000000e+00 : f32
    %20 = vector.broadcast %cst_11 : f32 to vector<64x64xf32>
    %21 = arith.addf %20, %19 : vector<64x64xf32>
    %22 = arith.divf %20, %21 : vector<64x64xf32>
    %c1 = arith.constant 1 : index
    %c0_12 = arith.constant 0 : index
    %c0_13 = arith.constant 0 : index
    %23 = vector.load %arg4[%c1, %c0_12, %c0_13] : memref<2x64x64xf32, #tpu.memory_space<vmem>>, vector<1x64x64xf32>
    %24 = vector.shape_cast %23 : vector<1x64x64xf32> to vector<64x64xf32>
    %25 = vector.shape_cast %22 : vector<64x64xf32> to vector<1x64x64xf32>
    tpu.vector_store %arg4[%c1, %c0_12, %c0_13], %25 {strides = array<i32>} : memref<2x64x64xf32, #tpu.memory_space<vmem>>, vector<1x64x64xf32>,
    return
  }
  func.func @transform_0(%arg0: i32) -> (i32, i32) {
    %c0_i32 = arith.constant 0 : i32
    %c0_i32_0 = arith.constant 0 : i32
    return %arg0, %c0_i32 : i32, i32
  }
  func.func @transform_1(%arg0: i32) -> (i32, i32) {
    %c0_i32 = arith.constant 0 : i32
    %c0_i32_0 = arith.constant 0 : i32
    %c0_i32_1 = arith.constant 0 : i32
    return %c0_i32, %c0_i32_0 : i32, i32
  }
  func.func @transform_2(%arg0: i32) -> (i32, i32) {
    %c0_i32 = arith.constant 0 : i32
    %c0_i32_0 = arith.constant 0 : i32
    %c0_i32_1 = arith.constant 0 : i32
    return %c0_i32, %c0_i32_0 : i32, i32
  }
  func.func @transform_3(%arg0: i32) -> (i32, i32, i32) {
    %c0_i32 = arith.constant 0 : i32
    %c0_i32_0 = arith.constant 0 : i32
    %c0_i32_1 = arith.constant 0 : i32
    return %arg0, %c0_i32, %c0_i32_0 : i32, i32, i32
  }
}

</mosaic_0001>

<llo_original>
// kernel: tpu_custom_call.1
$region0: #{tpu_custom_call.1}
  #allocation0 [shape = 'u32[]', space=smem, size = 0x4, offset = 0x4, fixed_abs, tag = 'smem constant byte address 0x4 - core index']
  #allocation1 [shape = 'u32[144,128]{1,0:T(1,128)}', space=vmem, size = 0x12000, scoped, tag = 'internal scratch']
  %s0 = inlined_call_operand.vmem [shape: f32[128,32], index: 0, kind: input, shape index: {}]
  %s1 = inlined_call_operand.vmem [shape: f32[32,32], index: 1, kind: input, shape index: {}]
  %s2 = inlined_call_operand.vmem [shape: f32[1,32], index: 2, kind: input, shape index: {}]
  %s3 = inlined_call_operand.hbm [shape: f32[2,64,64], index: 3, kind: output, shape index: {}]
  %s4 = sld [smem:[#allocation0]]
  $region22: #{tpu_custom_call.1} parent=0
    _
  %s6 = ssub.s32 1, %s4
  %s7 = scalar_select 0, %s6, %s4
  $region1: #{tpu_custom_call.1} parent=0
    #allocation2 [shape = 'u8[65536]{0}', space=vmem, size = 0x10000, scoped, tag = 'output window, operand 0, single buffered']
    #allocation3 [shape = 's32[1]{0}', space=sflag, size = 0x4, scoped, tag = 'scoped memory for tpu_custom_call.1']
    %8 = vsyncpa [#allocation3], 0
    // Predicated region
    $region2: #{tpu_custom_call.1} parent=1 // pred_check
      _
    $region3: #{tpu_custom_call.1} parent=1 // pred_check_branch
      %10 = sbr.rel (0) target = $region5
    $region4: #{tpu_custom_call.1} parent=1 // pred_region
      _
    $region5: #{tpu_custom_call.1} parent=1 // pred_fallthru
      _
    // Predicated region
    $region6: #{tpu_custom_call.1} parent=1 // pred_check
      _
    $region7: #{tpu_custom_call.1} parent=1 // pred_check_branch
      %12 = sbr.rel (0) target = $region9
    $region8: #{tpu_custom_call.1} parent=1 // pred_region
      _
    $region9: #{tpu_custom_call.1} parent=1 // pred_fallthru
      _
    // Predicated region
    $region10: #{tpu_custom_call.1} parent=1 // pred_check
      _
    $region11: #{tpu_custom_call.1} parent=1 // pred_check_branch
      %14 = sbr.rel (0) target = $region13
    $region12: #{tpu_custom_call.1} parent=1 // pred_region
      _
    $region13: #{tpu_custom_call.1} parent=1 // pred_fallthru
      _
    %v15 = vld [vmem:[%s0] sm:$0xff]
    %v16 = vld [vmem:[%s0 + $0x8] sm:$0xff]
    %v17 = vld [vmem:[%s0 + $0x10] sm:$0xff]
    %v18 = vld [vmem:[%s0 + $0x18] sm:$0xff]
    %v19 = vld [vmem:[%s0 + $0x20] sm:$0xff]
    %v20 = vld [vmem:[%s0 + $0x28] sm:$0xff]
    %v21 = vld [vmem:[%s0 + $0x30] sm:$0xff]
    %v22 = vld [vmem:[%s0 + $0x38] sm:$0xff]
    %v23 = vld [vmem:[%s0 + $0x40] sm:$0xff]
    %v24 = vld [vmem:[%s0 + $0x48] sm:$0xff]
    %v25 = vld [vmem:[%s0 + $0x50] sm:$0xff]
    %v26 = vld [vmem:[%s0 + $0x58] sm:$0xff]
    %v27 = vld [vmem:[%s0 + $0x60] sm:$0xff]
    %v28 = vld [vmem:[%s0 + $0x68] sm:$0xff]
    %v29 = vld [vmem:[%s0 + $0x70] sm:$0xff]
    %v30 = vld [vmem:[%s0 + $0x78] sm:$0xff]
    %v31 = vld [vmem:[%s1] sm:$0xff]
    %v32 = vld [vmem:[%s1 + $0x8] sm:$0xff]
    %v33 = vld [vmem:[%s1 + $0x10] sm:$0xff]
    %v34 = vld [vmem:[%s1 + $0x18] sm:$0xff]
    %v35 = vld [vmem:[%s2] sm:$0x1]
    %v37 = vlaneseq
    %v38 = vshrl.u32 %v37, 7
    %v39 = vsub.s32 0, %v38
    %v40 = vrot.slane %v35, %v39
    %vm42 = vcmask 261120
    %v44 = vsel %vm42, %v15, 0
    %v47 = vsel %vm42, %v16, 0
    %v50 = vsel %vm42, %v17, 0
    %v53 = vsel %vm42, %v18, 0
    %v56 = vsel %vm42, %v19, 0
    %v59 = vsel %vm42, %v20, 0
    %v62 = vsel %vm42, %v21, 0
    %v65 = vsel %vm42, %v22, 0
    %v68 = vsel %vm42, %v23, 0
    %v71 = vsel %vm42, %v24, 0
    %v74 = vsel %vm42, %v25, 0
    %v77 = vsel %vm42, %v26, 0
    %v80 = vsel %vm42, %v27, 0
    %v83 = vsel %vm42, %v28, 0
    %v86 = vsel %vm42, %v29, 0
    %v89 = vsel %vm42, %v30, 0
    %v92 = vsel %vm42, %v31, 0
    %v95 = vsel %vm42, %v32, 0
    %v98 = vsel %vm42, %v33, 0
    %v101 = vsel %vm42, %v34, 0
    %103 = vmatprep.subr.mxu0 0.0
    %104 = vmatpush1.xpose.msra.mxu0 %v92
    %105 = vmatprep.subr.mxu0 0.0
    %106 = vmatpush1.xpose.msra.mxu0 %v95
    %107 = vmatprep.subr.mxu0 0.0
    %108 = vmatpush1.xpose.msra.mxu0 %v98
    %109 = vmatprep.subr.mxu0 0.0
    %110 = vmatpush1.xpose.msra.mxu0 %v101
    %111 = vmatprep.subr.mxu0 0.0
    %112 = vmatpush1.xpose.msra.mxu0 0.0
    %113 = vmatprep.subr.mxu0 0.0
    %114 = vmatpush1.xpose.msra.mxu0 0.0
    %115 = vmatprep.subr.mxu0 0.0
    %116 = vmatpush1.xpose.msra.mxu0 0.0
    %117 = vmatprep.subr.mxu0 0.0
    %118 = vmatpush1.xpose.msra.mxu0 0.0
    %119 = vmatprep.subr.mxu0 0.0
    %120 = vmatpush1.xpose.msra.mxu0 0.0
    %121 = vmatprep.subr.mxu0 0.0
    %122 = vmatpush1.xpose.msra.mxu0 0.0
    %123 = vmatprep.subr.mxu0 0.0
    %124 = vmatpush1.xpose.msra.mxu0 0.0
    %125 = vmatprep.subr.mxu0 0.0
    %126 = vmatpush1.xpose.msra.mxu0 0.0
    %127 = vmatprep.subr.mxu0 0.0
    %128 = vmatpush1.xpose.msra.mxu0 0.0
    %129 = vmatprep.subr.mxu0 0.0
    %130 = vmatpush1.xpose.msra.mxu0 0.0
    %131 = vmatprep.subr.mxu0 0.0
    %132 = vmatpush1.xpose.msra.mxu0 0.0
    %133 = vmatprep.subr.mxu0 0.0
    %134 = vmatpush1.xpose.msra.mxu0 0.0
    %135 = vmatprep.subr.mxu0 0.0
    %136 = vmatpush1.xpose.msra.mxu0 0.0
    %137 = vmatprep.subr.mxu0 0.0
    %138 = vmatpush1.xpose.msra.mxu0 0.0
    %139 = vmatprep.subr.mxu0 0.0
    %140 = vmatpush1.xpose.msra.mxu0 0.0
    %141 = vmatprep.subr.mxu0 0.0
    %142 = vmatpush1.xpose.msra.mxu0 0.0
    %143 = vmatprep.subr.mxu0 0.0
    %144 = vmatpush1.xpose.msra.mxu0 0.0
    %145 = vmatprep.subr.mxu0 0.0
    %146 = vmatpush1.xpose.msra.mxu0 0.0
    %147 = vmatprep.subr.mxu0 0.0
    %148 = vmatpush1.xpose.msra.mxu0 0.0
    %149 = vmatprep.subr.mxu0 0.0
    %150 = vmatpush1.xpose.msra.mxu0 0.0
    %151 = vmatprep.subr.mxu0 0.0
    %152 = vmatpush1.xpose.msra.mxu0 0.0
    %153 = vmatprep.subr.mxu0 0.0
    %154 = vmatpush1.xpose.msra.mxu0 0.0
    %155 = vmatprep.subr.mxu0 0.0
    %156 = vmatpush1.xpose.msra.mxu0 0.0
    %157 = vmatprep.subr.mxu0 0.0
    %158 = vmatpush1.xpose.msra.mxu0 0.0
    %159 = vmatprep.subr.mxu0 0.0
    %160 = vmatpush1.xpose.msra.mxu0 0.0
    %161 = vmatprep.subr.mxu0 0.0
    %162 = vmatpush1.xpose.msra.mxu0 0.0
    %163 = vmatprep.subr.mxu0 0.0
    %164 = vmatpush1.xpose.msra.mxu0 0.0
    %165 = vmatprep.subr.mxu0 0.0
    %166 = vmatpush1.xpose.msra.mxu0 0.0
    %167 = vmatprep.mubr.f32.mxu0 0.0
    %168 = vmatmul.mubr.f32.gmra.mrb[0].mxu0 %v44
    %v169 = vpop.f32.mrb[0].mxu0
    %v170 = vadd.f32 %v40, %v169
    %v171 = vpop.f32.mrb[0].mxu0
    %172 = vmatprep.mubr.f32.mxu0 0.0
    %173 = vmatmul.mubr.f32.gmra.mrb[0].mxu0 %v47
    %v174 = vpop.f32.mrb[0].mxu0
    %v175 = vadd.f32 %v40, %v174
    %v176 = vpop.f32.mrb[0].mxu0
    %177 = vmatprep.mubr.f32.mxu0 0.0
    %178 = vmatmul.mubr.f32.gmra.mrb[0].mxu0 %v50
    %v179 = vpop.f32.mrb[0].mxu0
    %v180 = vadd.f32 %v40, %v179
    %v181 = vpop.f32.mrb[0].mxu0
    %182 = vmatprep.mubr.f32.mxu0 0.0
    %183 = vmatmul.mubr.f32.gmra.mrb[0].mxu0 %v53
    %v184 = vpop.f32.mrb[0].mxu0
    %v185 = vadd.f32 %v40, %v184
    %v186 = vpop.f32.mrb[0].mxu0
    %187 = vmatprep.mubr.f32.mxu0 0.0
    %188 = vmatmul.mubr.f32.gmra.mrb[0].mxu0 %v56
    %v189 = vpop.f32.mrb[0].mxu0
    %v190 = vadd.f32 %v40, %v189
    %v191 = vpop.f32.mrb[0].mxu0
    %192 = vmatprep.mubr.f32.mxu0 0.0
    %193 = vmatmul.mubr.f32.gmra.mrb[0].mxu0 %v59
    %v194 = vpop.f32.mrb[0].mxu0
    %v195 = vadd.f32 %v40, %v194
    %v196 = vpop.f32.mrb[0].mxu0
    %197 = vmatprep.mubr.f32.mxu0 0.0
    %198 = vmatmul.mubr.f32.gmra.mrb[0].mxu0 %v62
    %v199 = vpop.f32.mrb[0].mxu0
    %v200 = vadd.f32 %v40, %v199
    %v201 = vpop.f32.mrb[0].mxu0
    %202 = vmatprep.mubr.f32.mxu0 0.0
    %203 = vmatmul.mubr.f32.gmra.mrb[0].mxu0 %v65
    %v204 = vpop.f32.mrb[0].mxu0
    %v205 = vadd.f32 %v40, %v204
    %v206 = vpop.f32.mrb[0].mxu0
    %207 = vmatprep.mubr.f32.mxu0 0.0
    %208 = vmatmul.mubr.f32.gmra.mrb[0].mxu0 %v68
    %v209 = vpop.f32.mrb[0].mxu0
    %v210 = vadd.f32 %v40, %v209
    %v211 = vpop.f32.mrb[0].mxu0
    %212 = vmatprep.mubr.f32.mxu0 0.0
    %213 = vmatmul.mubr.f32.gmra.mrb[0].mxu0 %v71
    %v214 = vpop.f32.mrb[0].mxu0
    %v215 = vadd.f32 %v40, %v214
    %v216 = vpop.f32.mrb[0].mxu0
    %217 = vmatprep.mubr.f32.mxu0 0.0
    %218 = vmatmul.mubr.f32.gmra.mrb[0].mxu0 %v74
    %v219 = vpop.f32.mrb[0].mxu0
    %v220 = vadd.f32 %v40, %v219
    %v221 = vpop.f32.mrb[0].mxu0
    %222 = vmatprep.mubr.f32.mxu0 0.0
    %223 = vmatmul.mubr.f32.gmra.mrb[0].mxu0 %v77
    %v224 = vpop.f32.mrb[0].mxu0
    %v225 = vadd.f32 %v40, %v224
    %v226 = vpop.f32.mrb[0].mxu0
    %227 = vmatprep.mubr.f32.mxu0 0.0
    %228 = vmatmul.mubr.f32.gmra.mrb[0].mxu0 %v80
    %v229 = vpop.f32.mrb[0].mxu0
    %v230 = vadd.f32 %v40, %v229
    %v231 = vpop.f32.mrb[0].mxu0
    %232 = vmatprep.mubr.f32.mxu0 0.0
    %233 = vmatmul.mubr.f32.gmra.mrb[0].mxu0 %v83
    %v234 = vpop.f32.mrb[0].mxu0
    %v235 = vadd.f32 %v40, %v234
    %v236 = vpop.f32.mrb[0].mxu0
    %237 = vmatprep.mubr.f32.mxu0 0.0
    %238 = vmatmul.mubr.f32.gmra.mrb[0].mxu0 %v86
    %v239 = vpop.f32.mrb[0].mxu0
    %v240 = vadd.f32 %v40, %v239
    %v241 = vpop.f32.mrb[0].mxu0
    %242 = vmatprep.mubr.f32.mxu0 0.0
    %243 = vmatmul.mubr.f32.gmra.mrb[0].mxu0 %v89
    %v244 = vpop.f32.mrb[0].mxu0
    %v245 = vadd.f32 %v40, %v244
    %v246 = vpop.f32.mrb[0].mxu0
    %247 = vdwg.mxu0
    %v249 = vsel %vm42, %v170, 0
    %v252 = vsel %vm42, %v175, 0
    %v255 = vsel %vm42, %v180, 0
    %v258 = vsel %vm42, %v185, 0
    %v261 = vsel %vm42, %v190, 0
    %v264 = vsel %vm42, %v195, 0
    %v267 = vsel %vm42, %v200, 0
    %v270 = vsel %vm42, %v205, 0
    %272 = vmatprep.subr.mxu0 0.0
    %273 = vmatpush1.xpose.msra.mxu0 %v249
    %274 = vmatprep.subr.mxu0 0.0
    %275 = vmatpush1.xpose.msra.mxu0 %v252
    %276 = vmatprep.subr.mxu0 0.0
    %277 = vmatpush1.xpose.msra.mxu0 %v255
    %278 = vmatprep.subr.mxu0 0.0
    %279 = vmatpush1.xpose.msra.mxu0 %v258
    %280 = vmatprep.subr.mxu0 0.0
    %281 = vmatpush1.xpose.msra.mxu0 %v261
    %282 = vmatprep.subr.mxu0 0.0
    %283 = vmatpush1.xpose.msra.mxu0 %v264
    %284 = vmatprep.subr.mxu0 0.0
    %285 = vmatpush1.xpose.msra.mxu0 %v267
    %286 = vmatprep.subr.mxu0 0.0
    %287 = vmatpush1.xpose.msra.mxu0 %v270
    %288 = vmatprep.subr.mxu0 0.0
    %289 = vmatpush1.xpose.msra.mxu0 0.0
    %290 = vmatprep.subr.mxu0 0.0
    %291 = vmatpush1.xpose.msra.mxu0 0.0
    %292 = vmatprep.subr.mxu0 0.0
    %293 = vmatpush1.xpose.msra.mxu0 0.0
    %294 = vmatprep.subr.mxu0 0.0
    %295 = vmatpush1.xpose.msra.mxu0 0.0
    %296 = vmatprep.subr.mxu0 0.0
    %297 = vmatpush1.xpose.msra.mxu0 0.0
    %298 = vmatprep.subr.mxu0 0.0
    %299 = vmatpush1.xpose.msra.mxu0 0.0
    %300 = vmatprep.subr.mxu0 0.0
    %301 = vmatpush1.xpose.msra.mxu0 0.0
    %302 = vmatprep.subr.mxu0 0.0
    %303 = vmatpush1.xpose.msra.mxu0 0.0
    %304 = vmatprep.subr.mxu0 0.0
    %305 = vmatpush1.xpose.msra.mxu0 0.0
    %306 = vmatprep.subr.mxu0 0.0
    %307 = vmatpush1.xpose.msra.mxu0 0.0
    %308 = vmatprep.subr.mxu0 0.0
    %309 = vmatpush1.xpose.msra.mxu0 0.0
    %310 = vmatprep.subr.mxu0 0.0
    %311 = vmatpush1.xpose.msra.mxu0 0.0
    %312 = vmatprep.subr.mxu0 0.0
    %313 = vmatpush1.xpose.msra.mxu0 0.0
    %314 = vmatprep.subr.mxu0 0.0
    %315 = vmatpush1.xpose.msra.mxu0 0.0
    %316 = vmatprep.subr.mxu0 0.0
    %317 = vmatpush1.xpose.msra.mxu0 0.0
    %318 = vmatprep.subr.mxu0 0.0
    %319 = vmatpush1.xpose.msra.mxu0 0.0
    %320 = vmatprep.subr.mxu0 0.0
    %321 = vmatpush1.xpose.msra.mxu0 0.0
    %322 = vmatprep.subr.mxu0 0.0
    %323 = vmatpush1.xpose.msra.mxu0 0.0
    %324 = vmatprep.subr.mxu0 0.0
    %325 = vmatpush1.xpose.msra.mxu0 0.0
    %326 = vmatprep.subr.mxu0 0.0
    %327 = vmatpush1.xpose.msra.mxu0 0.0
    %328 = vmatprep.subr.mxu0 0.0
    %329 = vmatpush1.xpose.msra.mxu0 0.0
    %330 = vmatprep.subr.mxu0 0.0
    %331 = vmatpush1.xpose.msra.mxu0 0.0
    %332 = vmatprep.subr.mxu0 0.0
    %333 = vmatpush1.xpose.msra.mxu0 0.0
    %334 = vmatprep.subr.mxu0 0.0
    %335 = vmatpush1.xpose.msra.mxu0 0.0
    %336 = vmatprep.mubr.f32.mxu0 0.0
    %337 = vmatmul.mubr.f32.gmra.mrb[0].mxu0 %v249
    %v338 = vpop.f32.mrb[0].mxu0
    %v339 = vadd.f32 0.0, %v338
    %v340 = vpop.f32.mrb[0].mxu0
    %341 = vmatprep.mubr.f32.mxu0 0.0
    %342 = vmatmul.mubr.f32.gmra.mrb[0].mxu0 %v252
    %v343 = vpop.f32.mrb[0].mxu0
    %v344 = vadd.f32 0.0, %v343
    %v345 = vpop.f32.mrb[0].mxu0
    %346 = vmatprep.mubr.f32.mxu0 0.0
    %347 = vmatmul.mubr.f32.gmra.mrb[0].mxu0 %v255
    %v348 = vpop.f32.mrb[0].mxu0
    %v349 = vadd.f32 0.0, %v348
    %v350 = vpop.f32.mrb[0].mxu0
    %351 = vmatprep.mubr.f32.mxu0 0.0
    %352 = vmatmul.mubr.f32.gmra.mrb[0].mxu0 %v258
    %v353 = vpop.f32.mrb[0].mxu0
    %v354 = vadd.f32 0.0, %v353
    %v355 = vpop.f32.mrb[0].mxu0
    %356 = vmatprep.mubr.f32.mxu0 0.0
    %357 = vmatmul.mubr.f32.gmra.mrb[0].mxu0 %v261
    %v358 = vpop.f32.mrb[0].mxu0
    %v359 = vadd.f32 0.0, %v358
    %v360 = vpop.f32.mrb[0].mxu0
    %361 = vmatprep.mubr.f32.mxu0 0.0
    %362 = vmatmul.mubr.f32.gmra.mrb[0].mxu0 %v264
    %v363 = vpop.f32.mrb[0].mxu0
    %v364 = vadd.f32 0.0, %v363
    %v365 = vpop.f32.mrb[0].mxu0
    %366 = vmatprep.mubr.f32.mxu0 0.0
    %367 = vmatmul.mubr.f32.gmra.mrb[0].mxu0 %v267
    %v368 = vpop.f32.mrb[0].mxu0
    %v369 = vadd.f32 0.0, %v368
    %v370 = vpop.f32.mrb[0].mxu0
    %371 = vmatprep.mubr.f32.mxu0 0.0
    %372 = vmatmul.mubr.f32.gmra.mrb[0].mxu0 %v270
    %v373 = vpop.f32.mrb[0].mxu0
    %v374 = vadd.f32 0.0, %v373
    %v375 = vpop.f32.mrb[0].mxu0
    %376 = vdwg.mxu0
    %v377 = vxor.u32 %v339, 2147483648
    %v378 = vxor.u32 %v344, 2147483648
    %v379 = vxor.u32 %v349, 2147483648
    %v380 = vxor.u32 %v354, 2147483648
    %v381 = vxor.u32 %v359, 2147483648
    %v382 = vxor.u32 %v364, 2147483648
    %v383 = vxor.u32 %v369, 2147483648
    %v384 = vxor.u32 %v374, 2147483648
    %v385 = vmul.f32 %v377, 1.442695
    %v386 = vpow.pop %v385
    %v387 = vmul.f32 %v378, 1.442695
    %v388 = vpow.pop %v387
    %v389 = vmul.f32 %v379, 1.442695
    %v390 = vpow.pop %v389
    %v391 = vmul.f32 %v380, 1.442695
    %v392 = vpow.pop %v391
    %v393 = vmul.f32 %v381, 1.442695
    %v394 = vpow.pop %v393
    %v395 = vmul.f32 %v382, 1.442695
    %v396 = vpow.pop %v395
    %v397 = vmul.f32 %v383, 1.442695
    %v398 = vpow.pop %v397
    %v399 = vmul.f32 %v384, 1.442695
    %v400 = vpow.pop %v399
    %v401 = vadd.f32 %v386, 1.0
    %v402 = vadd.f32 %v388, 1.0
    %v403 = vadd.f32 %v390, 1.0
    %v404 = vadd.f32 %v392, 1.0
    %v405 = vadd.f32 %v394, 1.0
    %v406 = vadd.f32 %v396, 1.0
    %v407 = vadd.f32 %v398, 1.0
    %v408 = vadd.f32 %v400, 1.0
    %v409 = vrcp.pop %v401
    %v410 = vmul.f32 1.0, %v409
    %v411 = vrcp.pop %v402
    %v412 = vmul.f32 1.0, %v411
    %v413 = vrcp.pop %v403
    %v414 = vmul.f32 1.0, %v413
    %v415 = vrcp.pop %v404
    %v416 = vmul.f32 1.0, %v415
    %v417 = vrcp.pop %v405
    %v418 = vmul.f32 1.0, %v417
    %v419 = vrcp.pop %v406
    %v420 = vmul.f32 1.0, %v419
    %v421 = vrcp.pop %v407
    %v422 = vmul.f32 1.0, %v421
    %v423 = vrcp.pop %v408
    %v424 = vmul.f32 1.0, %v423
    %vm425 = vcmask 523264
    %426 = vst.msk [vmem:[#allocation2] sm:$0xff] %vm425, %v410
    %427 = vst.msk [vmem:[#allocation2 + $0x8] sm:$0xff] %vm425, %v412
    %428 = vst.msk [vmem:[#allocation2 + $0x10] sm:$0xff] %vm425, %v414
    %429 = vst.msk [vmem:[#allocation2 + $0x18] sm:$0xff] %vm425, %v416
    %430 = vst.msk [vmem:[#allocation2 + $0x20] sm:$0xff] %vm425, %v418
    %431 = vst.msk [vmem:[#allocation2 + $0x28] sm:$0xff] %vm425, %v420
    %432 = vst.msk [vmem:[#allocation2 + $0x30] sm:$0xff] %vm425, %v422
    %433 = vst.msk [vmem:[#allocation2 + $0x38] sm:$0xff] %vm425, %v424
    %v435 = vsel %vm42, %v210, 0
    %v438 = vsel %vm42, %v215, 0
    %v441 = vsel %vm42, %v220, 0
    %v444 = vsel %vm42, %v225, 0
    %v447 = vsel %vm42, %v230, 0
    %v450 = vsel %vm42, %v235, 0
    %v453 = vsel %vm42, %v240, 0
    %v456 = vsel %vm42, %v245, 0
    %458 = vmatprep.subr.mxu0 0.0
    %459 = vmatpush1.xpose.msra.mxu0 %v435
    %460 = vmatprep.subr.mxu0 0.0
    %461 = vmatpush1.xpose.msra.mxu0 %v438
    %462 = vmatprep.subr.mxu0 0.0
    %463 = vmatpush1.xpose.msra.mxu0 %v441
    %464 = vmatprep.subr.mxu0 0.0
    %465 = vmatpush1.xpose.msra.mxu0 %v444
    %466 = vmatprep.subr.mxu0 0.0
    %467 = vmatpush1.xpose.msra.mxu0 %v447
    %468 = vmatprep.subr.mxu0 0.0
    %469 = vmatpush1.xpose.msra.mxu0 %v450
    %470 = vmatprep.subr.mxu0 0.0
    %471 = vmatpush1.xpose.msra.mxu0 %v453
    %472 = vmatprep.subr.mxu0 0.0
    %473 = vmatpush1.xpose.msra.mxu0 %v456
    %474 = vmatprep.subr.mxu0 0.0
    %475 = vmatpush1.xpose.msra.mxu0 0.0
    %476 = vmatprep.subr.mxu0 0.0
    %477 = vmatpush1.xpose.msra.mxu0 0.0
    %478 = vmatprep.subr.mxu0 0.0
    %479 = vmatpush1.xpose.msra.mxu0 0.0
    %480 = vmatprep.subr.mxu0 0.0
    %481 = vmatpush1.xpose.msra.mxu0 0.0
    %482 = vmatprep.subr.mxu0 0.0
    %483 = vmatpush1.xpose.msra.mxu0 0.0
    %484 = vmatprep.subr.mxu0 0.0
    %485 = vmatpush1.xpose.msra.mxu0 0.0
    %486 = vmatprep.subr.mxu0 0.0
    %487 = vmatpush1.xpose.msra.mxu0 0.0
    %488 = vmatprep.subr.mxu0 0.0
    %489 = vmatpush1.xpose.msra.mxu0 0.0
    %490 = vmatprep.subr.mxu0 0.0
    %491 = vmatpush1.xpose.msra.mxu0 0.0
    %492 = vmatprep.subr.mxu0 0.0
    %493 = vmatpush1.xpose.msra.mxu0 0.0
    %494 = vmatprep.subr.mxu0 0.0
    %495 = vmatpush1.xpose.msra.mxu0 0.0
    %496 = vmatprep.subr.mxu0 0.0
    %497 = vmatpush1.xpose.msra.mxu0 0.0
    %498 = vmatprep.subr.mxu0 0.0
    %499 = vmatpush1.xpose.msra.mxu0 0.0
    %500 = vmatprep.subr.mxu0 0.0
    %501 = vmatpush1.xpose.msra.mxu0 0.0
    %502 = vmatprep.subr.mxu0 0.0
    %503 = vmatpush1.xpose.msra.mxu0 0.0
    %504 = vmatprep.subr.mxu0 0.0
    %505 = vmatpush1.xpose.msra.mxu0 0.0
    %506 = vmatprep.subr.mxu0 0.0
    %507 = vmatpush1.xpose.msra.mxu0 0.0
    %508 = vmatprep.subr.mxu0 0.0
    %509 = vmatpush1.xpose.msra.mxu0 0.0
    %510 = vmatprep.subr.mxu0 0.0
    %511 = vmatpush1.xpose.msra.mxu0 0.0
    %512 = vmatprep.subr.mxu0 0.0
    %513 = vmatpush1.xpose.msra.mxu0 0.0
    %514 = vmatprep.subr.mxu0 0.0
    %515 = vmatpush1.xpose.msra.mxu0 0.0
    %516 = vmatprep.subr.mxu0 0.0
    %517 = vmatpush1.xpose.msra.mxu0 0.0
    %518 = vmatprep.subr.mxu0 0.0
    %519 = vmatpush1.xpose.msra.mxu0 0.0
    %520 = vmatprep.subr.mxu0 0.0
    %521 = vmatpush1.xpose.msra.mxu0 0.0
    %522 = vmatprep.mubr.f32.mxu0 0.0
    %523 = vmatmul.mubr.f32.gmra.mrb[0].mxu0 %v435
    %v524 = vpop.f32.mrb[0].mxu0
    %v525 = vadd.f32 0.0, %v524
    %v526 = vpop.f32.mrb[0].mxu0
    %527 = vmatprep.mubr.f32.mxu0 0.0
    %528 = vmatmul.mubr.f32.gmra.mrb[0].mxu0 %v438
    %v529 = vpop.f32.mrb[0].mxu0
    %v530 = vadd.f32 0.0, %v529
    %v531 = vpop.f32.mrb[0].mxu0
    %532 = vmatprep.mubr.f32.mxu0 0.0
    %533 = vmatmul.mubr.f32.gmra.mrb[0].mxu0 %v441
    %v534 = vpop.f32.mrb[0].mxu0
    %v535 = vadd.f32 0.0, %v534
    %v536 = vpop.f32.mrb[0].mxu0
    %537 = vmatprep.mubr.f32.mxu0 0.0
    %538 = vmatmul.mubr.f32.gmra.mrb[0].mxu0 %v444
    %v539 = vpop.f32.mrb[0].mxu0
    %v540 = vadd.f32 0.0, %v539
    %v541 = vpop.f32.mrb[0].mxu0
    %542 = vmatprep.mubr.f32.mxu0 0.0
    %543 = vmatmul.mubr.f32.gmra.mrb[0].mxu0 %v447
    %v544 = vpop.f32.mrb[0].mxu0
    %v545 = vadd.f32 0.0, %v544
    %v546 = vpop.f32.mrb[0].mxu0
    %547 = vmatprep.mubr.f32.mxu0 0.0
    %548 = vmatmul.mubr.f32.gmra.mrb[0].mxu0 %v450
    %v549 = vpop.f32.mrb[0].mxu0
    %v550 = vadd.f32 0.0, %v549
    %v551 = vpop.f32.mrb[0].mxu0
    %552 = vmatprep.mubr.f32.mxu0 0.0
    %553 = vmatmul.mubr.f32.gmra.mrb[0].mxu0 %v453
    %v554 = vpop.f32.mrb[0].mxu0
    %v555 = vadd.f32 0.0, %v554
    %v556 = vpop.f32.mrb[0].mxu0
    %557 = vmatprep.mubr.f32.mxu0 0.0
    %558 = vmatmul.mubr.f32.gmra.mrb[0].mxu0 %v456
    %v559 = vpop.f32.mrb[0].mxu0
    %v560 = vadd.f32 0.0, %v559
    %v561 = vpop.f32.mrb[0].mxu0
    %562 = vdwg.mxu0
    %v563 = vxor.u32 %v525, 2147483648
    %v564 = vxor.u32 %v530, 2147483648
    %v565 = vxor.u32 %v535, 2147483648
    %v566 = vxor.u32 %v540, 2147483648
    %v567 = vxor.u32 %v545, 2147483648
    %v568 = vxor.u32 %v550, 2147483648
    %v569 = vxor.u32 %v555, 2147483648
    %v570 = vxor.u32 %v560, 2147483648
    %v571 = vmul.f32 %v563, 1.442695
    %v572 = vpow.pop %v571
    %v573 = vmul.f32 %v564, 1.442695
    %v574 = vpow.pop %v573
    %v575 = vmul.f32 %v565, 1.442695
    %v576 = vpow.pop %v575
    %v577 = vmul.f32 %v566, 1.442695
    %v578 = vpow.pop %v577
    %v579 = vmul.f32 %v567, 1.442695
    %v580 = vpow.pop %v579
    %v581 = vmul.f32 %v568, 1.442695
    %v582 = vpow.pop %v581
    %v583 = vmul.f32 %v569, 1.442695
    %v584 = vpow.pop %v583
    %v585 = vmul.f32 %v570, 1.442695
    %v586 = vpow.pop %v585
    %v587 = vadd.f32 %v572, 1.0
    %v588 = vadd.f32 %v574, 1.0
    %v589 = vadd.f32 %v576, 1.0
    %v590 = vadd.f32 %v578, 1.0
    %v591 = vadd.f32 %v580, 1.0
    %v592 = vadd.f32 %v582, 1.0
    %v593 = vadd.f32 %v584, 1.0
    %v594 = vadd.f32 %v586, 1.0
    %v595 = vrcp.pop %v587
    %v596 = vmul.f32 1.0, %v595
    %v597 = vrcp.pop %v588
    %v598 = vmul.f32 1.0, %v597
    %v599 = vrcp.pop %v589
    %v600 = vmul.f32 1.0, %v599
    %v601 = vrcp.pop %v590
    %v602 = vmul.f32 1.0, %v601
    %v603 = vrcp.pop %v591
    %v604 = vmul.f32 1.0, %v603
    %v605 = vrcp.pop %v592
    %v606 = vmul.f32 1.0, %v605
    %v607 = vrcp.pop %v593
    %v608 = vmul.f32 1.0, %v607
    %v609 = vrcp.pop %v594
    %v610 = vmul.f32 1.0, %v609
    %s611 = scalar_lea.vmem [#allocation2], 64
    %612 = vst.msk [vmem:[%s611] sm:$0xff] %vm425, %v596
    %613 = vst.msk [vmem:[%s611 + $0x8] sm:$0xff] %vm425, %v598
    %614 = vst.msk [vmem:[%s611 + $0x10] sm:$0xff] %vm425, %v600
    %615 = vst.msk [vmem:[%s611 + $0x18] sm:$0xff] %vm425, %v602
    %616 = vst.msk [vmem:[%s611 + $0x20] sm:$0xff] %vm425, %v604
    %617 = vst.msk [vmem:[%s611 + $0x28] sm:$0xff] %vm425, %v606
    %618 = vst.msk [vmem:[%s611 + $0x30] sm:$0xff] %vm425, %v608
    %619 = vst.msk [vmem:[%s611 + $0x38] sm:$0xff] %vm425, %v610
    // Predicated region
    $region14: #{tpu_custom_call.1} parent=1 // pred_check
      _
    $region15: #{tpu_custom_call.1} parent=1 // pred_check_branch
      %621 = sbr.rel (0) target = $region17
    $region16: #{tpu_custom_call.1} parent=1 // pred_region
      %s623 = ssub.s32 2048, 2048
      %624 = vsyncadd [#allocation3], %s623
      %s625 = sshll.u32 [#allocation2], 4
      %s626 = int_to_ptr.vmem [resolvable:$true] %s625
      %631 = dma.vmem_to_hbm [thread:$0]  %s626, 2048, %s3, [#allocation3], 128, 128, 8
    $region17: #{tpu_custom_call.1} parent=1 // pred_fallthru
      _
    // Predicated region
    $region18: #{tpu_custom_call.1} parent=1 // pred_check
      _
    $region19: #{tpu_custom_call.1} parent=1 // pred_check_branch
      %633 = sbr.rel (0) target = $region21
    $region20: #{tpu_custom_call.1} parent=1 // pred_region
      %634 = dma.done [#allocation3], 2048
    $region21: #{tpu_custom_call.1} parent=1 // pred_fallthru
      _
    %635 = vsyncpa [#allocation3], 1

</llo_original>
